<compile_context>
chip_gen: v7x
topology: tpu7x:2x2x1
jax: 0.10.0
libtpu: 0.0.40
codegen_flags: <defaults>
</compile_context>

<pallas_src>
import math

import jax
import jax.numpy as jnp
from jax.experimental import pallas as pl
from jax.experimental.pallas import tpu as pltpu


def _global_graph_kernel(x_q_ref, x_kv_ref, bias_ref, wq_ref, wkv_ref,
                         bq_ref, bkv_ref, o_ref, m_sc, l_sc, acc_sc):
    """One (batch-tile, kv-tile) grid step of flash-style single-head attention.

    x_q_ref : (bt, N,  H)   f32   all query tokens of the batch tile
    x_kv_ref: (bt, Tk, H)   f32   key/value tokens of the current kv tile
    bias_ref: (bt, 1|N, Tk) bf16  additive bias (0 = attend, -1e4 = blocked)
    wq_ref  : (H, Hp)       bf16  Wq * 1/sqrt(H), zero-padded to Hp (128-multiple)
    wkv_ref : (H, 2*Hp)     bf16  [Wk | Wv], each zero-padded to Hp columns
    bq_ref  : (1, Hp) f32 ; bkv_ref : (1, 2*Hp) f32
    o_ref   : (bt, N, H)
    m_sc/l_sc: (bt, N, 1) f32 running max / running denominator
    acc_sc  : (bt, N, H)  f32 unnormalized context accumulator
    """
    kv = pl.program_id(1)
    bt, n, h = x_q_ref.shape
    tk = x_kv_ref.shape[1]
    hp = wq_ref.shape[1]

    @pl.when(kv == 0)
    def _():
        m_sc[...] = jnp.full(m_sc.shape, -jnp.inf, m_sc.dtype)
        l_sc[...] = jnp.zeros(l_sc.shape, l_sc.dtype)
        acc_sc[...] = jnp.zeros(acc_sc.shape, acc_sc.dtype)

    # Q projection for all N query tokens (scale already folded into wq/bq).
    # Recomputed per kv step; only matters when N > kv_tile, where it is ~H/Tk of
    # the score FLOPs.
    xq = x_q_ref[...].reshape(bt * n, h).astype(jnp.bfloat16)
    q = jnp.dot(xq, wq_ref[...], preferred_element_type=jnp.float32) + bq_ref[...]
    q = q.reshape(bt, n, hp).astype(jnp.bfloat16)

    # Fused K|V projection for the current kv tile (one wide MXU matmul).
    xkv = x_kv_ref[...].reshape(bt * tk, h).astype(jnp.bfloat16)
    kvp = jnp.dot(xkv, wkv_ref[...], preferred_element_type=jnp.float32) + bkv_ref[...]
    kvp = kvp.reshape(bt, tk, 2 * hp)
    k = kvp[:, :, :hp].astype(jnp.bfloat16)          # 128-lane-aligned slice
    v = kvp[:, :, hp:hp + h].astype(jnp.bfloat16)    # aligned offset, real H columns

    # Scores: contraction on the last dims (no explicit transpose). Zero-padded
    # columns of q/k contribute nothing, so the result is exact.
    s = jnp.einsum("bqd,bkd->bqk", q, k, preferred_element_type=jnp.float32)
    s = s + bias_ref[...].astype(jnp.float32)        # (bt,1,Tk) or (bt,N,Tk) broadcast

    # Online (flash) softmax update with f32 running stats.
    # TODO(synk): on v6e/v7x the exp / p tile could be bf16 (with an f32 row-sum) for
    # ~2x EUP throughput and half the temp; kept f32 so the same kernel is v5e-safe.
    m_new = jnp.maximum(m_sc[...], jnp.max(s, axis=-1, keepdims=True))
    alpha = jnp.exp(m_sc[...] - m_new)
    p = jnp.exp(s - m_new)
    l_sc[...] = alpha * l_sc[...] + jnp.sum(p, axis=-1, keepdims=True)
    acc_sc[...] = alpha * acc_sc[...] + jnp.einsum(
        "bqk,bkd->bqd", p.astype(jnp.bfloat16), v,
        preferred_element_type=jnp.float32)
    m_sc[...] = m_new

    @pl.when(kv == pl.num_programs(1) - 1)
    def _():
        # Deferred normalization: one multiply per output element; denom >= 1 after
        # the running-max subtraction, so the EUP approx reciprocal is safe.
        # TODO(synk): for H < 128 this store is lane-masked (vst.msk); a lane-dense
        # (bt, N*H) output slab would require an in-kernel minor-dim reshape — skipped
        # because the kernel is HBM-bound on bias/x traffic, not the store epilogue.
        o_ref[...] = (acc_sc[...] *
                      pl.reciprocal(l_sc[...], approx=True)).astype(o_ref.dtype)


def _round_up(x, m):
    return ((x + m - 1) // m) * m


def _largest_divisor_leq(n, cap):
    cap = max(1, min(n, cap))
    for d in range(cap, 0, -1):
        if n % d == 0:
            return d
    return 1


def _pad_cols(w, cols):
    h = w.shape[-1]
    if cols == h:
        return w
    return jnp.pad(w, [(0, 0)] * (w.ndim - 1) + [(0, cols - h)])


def _pick_kv_tile(n, cap):
    """Largest multiple of 128 that divides N and is <= cap; else the full N."""
    # TODO(synk): N not a multiple of 128 falls back to a single kv tile; ragged N
    # at very large sizes would need in-kernel key masking of the tail tile.
    if n <= cap or n % 128 != 0:
        return n
    best = 128
    t = 256
    while t <= cap:
        if n % t == 0:
            best = t
        t += 128
    return best


def _pick_batch_tile(b, n, hp, tk, bias_rows, budget_bytes):
    """Graphs per grid step, bounded by a per-generation-safe VMEM budget and by
    B//2 so a 2-TensorCore chip (v7x) always has >= 2 'parallel' grid steps."""
    lane_h = hp                                        # H dim is lane-padded in VMEM
    per_bt = (
        2 * n * lane_h * 4                             # x_q block (double-buffered)
        + 2 * tk * lane_h * 4                          # x_kv block
        + 2 * max(bias_rows, 8) * tk * 2               # bf16 bias block
        + 2 * n * lane_h * 4                           # output block
        + 2 * n * 128 * 4                              # m / l scratch (lane-padded)
        + n * lane_h * 4                               # acc scratch
        + 6 * n * hp + 12 * tk * hp                    # q / kv projection temps
        + 12 * n * tk                                  # scores f32 + exp f32 + p bf16
    )
    cap = max(1, min(budget_bytes // max(per_bt, 1), b // 2 if b >= 2 else 1))
    return _largest_divisor_leq(b, cap)


def global_graph_forward(hidden_states, attention_mask, params, *, mapping=None,
                         kv_tile_cap=512,
                         vmem_budget_bytes=24 * 1024 * 1024,
                         vmem_limit_bytes=48 * 1024 * 1024):
    """hidden_states: [B, N, H] float.
    attention_mask: None, [B, N] key-validity (1=attend / 0=blocked; preferred, O(N)
    HBM traffic), or a general [B, N, N] mask (original module semantics)."""
    del mapping  # unused by the reference forward
    hidden_states = hidden_states.astype(jnp.float32)
    B, N, H = hidden_states.shape
    hp = _round_up(H, 128)
    scale = 1.0 / math.sqrt(H)

    # Fused, 128-lane-aligned weights; 1/sqrt(H) folded into the Q projection.
    wq = _pad_cols(params["wq"].astype(jnp.float32) * scale, hp).astype(jnp.bfloat16)
    wkv = jnp.concatenate(
        [_pad_cols(params["wk"].astype(jnp.float32), hp),
         _pad_cols(params["wv"].astype(jnp.float32), hp)], axis=1).astype(jnp.bfloat16)
    bq = _pad_cols(params["bq"].astype(jnp.float32) * scale, hp)
    bkv = jnp.concatenate(
        [_pad_cols(params["bk"].astype(jnp.float32), hp),
         _pad_cols(params["bv"].astype(jnp.float32), hp)], axis=1)

    # Additive attention bias in bf16 (0 = attend, -1e4 = blocked); never f32 (B,N,N).
    if attention_mask is None:
        bias = jnp.zeros((B, 1, N), jnp.bfloat16)
    else:
        m = attention_mask.astype(jnp.float32)
        if m.ndim == 2:                                 # (B, N) key-validity vector
            bias = ((1.0 - m) * -10000.0).astype(jnp.bfloat16)[:, None, :]
        else:                                           # (B, N, N) general mask
            bias = ((1.0 - m) * -10000.0).astype(jnp.bfloat16)
    bias_rows = bias.shape[1]

    tk = _pick_kv_tile(N, kv_tile_cap)
    n_kv = N // tk
    bt = _pick_batch_tile(B, N, hp, tk, bias_rows, vmem_budget_bytes)

    cost = pl.CostEstimate(
        flops=int(2 * B * N * H * hp * n_kv            # Q projection (per kv tile)
                  + 2 * B * N * H * 2 * hp             # K|V projection
                  + 2 * B * N * N * hp                 # Q K^T
                  + 2 * B * N * N * H),                # P V
        transcendentals=int(B * N * N),
        bytes_accessed=int(2 * B * N * H * 4 + bias.size * 2
                           + (wq.size + wkv.size) * 2 + (bq.size + bkv.size) * 4
                           + B * N * H * 4))

    return pl.pallas_call(
        _global_graph_kernel,
        out_shape=jax.ShapeDtypeStruct((B, N, H), hidden_states.dtype),
        grid_spec=pltpu.PrefetchScalarGridSpec(
            num_scalar_prefetch=0,
            grid=(B // bt, n_kv),
            in_specs=[
                pl.BlockSpec((bt, N, H), lambda b, k: (b, 0, 0)),        # x (queries)
                pl.BlockSpec((bt, tk, H), lambda b, k: (b, k, 0)),       # x (kv tile)
                pl.BlockSpec((bt, bias_rows, tk), lambda b, k: (b, 0, k)),  # bias
                pl.BlockSpec((H, hp), lambda b, k: (0, 0)),              # Wq (scaled)
                pl.BlockSpec((H, 2 * hp), lambda b, k: (0, 0)),          # Wk|Wv
                pl.BlockSpec((1, hp), lambda b, k: (0, 0)),              # bq (scaled)
                pl.BlockSpec((1, 2 * hp), lambda b, k: (0, 0)),          # bk|bv
            ],
            out_specs=pl.BlockSpec((bt, N, H), lambda b, k: (b, 0, 0)),
            scratch_shapes=[
                pltpu.VMEM((bt, N, 1), jnp.float32),    # running max
                pltpu.VMEM((bt, N, 1), jnp.float32),    # running denominator
                pltpu.VMEM((bt, N, H), jnp.float32),    # unnormalized context
            ],
        ),
        compiler_params=pltpu.CompilerParams(
            dimension_semantics=("parallel", "arbitrary"),
            vmem_limit_bytes=vmem_limit_bytes),
        cost_estimate=cost,
    )(hidden_states, hidden_states, bias, wq, wkv, bq, bkv)


def init_params(key, hidden_size):
    ks = jax.random.split(key, 6)
    s = 1.0 / math.sqrt(hidden_size)
    return {
        "wq": jax.random.uniform(ks[0], (hidden_size, hidden_size), jnp.float32, -s, s),
        "bq": jax.random.uniform(ks[1], (1, hidden_size), jnp.float32, -s, s),
        "wk": jax.random.uniform(ks[2], (hidden_size, hidden_size), jnp.float32, -s, s),
        "bk": jax.random.uniform(ks[3], (1, hidden_size), jnp.float32, -s, s),
        "wv": jax.random.uniform(ks[4], (hidden_size, hidden_size), jnp.float32, -s, s),
        "bv": jax.random.uniform(ks[5], (1, hidden_size), jnp.float32, -s, s),
    }


def _reference(hidden_states, attention_mask, params):
    q = hidden_states @ params["wq"] + params["bq"]
    k = hidden_states @ params["wk"] + params["bk"]
    v = hidden_states @ params["wv"] + params["bv"]
    s = jnp.einsum("bnh,bmh->bnm", q, k) / math.sqrt(hidden_states.shape[-1])
    s = s + (1.0 - attention_mask) * (-10000.0)
    p = jax.nn.softmax(s, axis=-1)
    return jnp.einsum("bnm,bmh->bnh", p, v)


if __name__ == "__main__":
    B, N, H = 2, 8, 32
    key = jax.random.PRNGKey(0)
    k_x, k_m, k_p = jax.random.split(key, 3)

    hidden_states = jax.random.normal(k_x, (B, N, H), jnp.float32)
    # General (B, N, N) mask: 1 = attend, 0 = blocked; each row keeps its diagonal.
    mask_bits = (jax.random.uniform(k_m, (B, N, N)) > 0.3).astype(jnp.float32)
    eye = jnp.broadcast_to(jnp.eye(N, dtype=jnp.float32), (B, N, N))
    attention_mask = jnp.maximum(mask_bits, eye)
    params = init_params(k_p, H)

    out = jax.block_until_ready(
        global_graph_forward(hidden_states, attention_mask, params))
    ref = _reference(hidden_states, attention_mask, params)
    assert out.shape == (B, N, H)
    # bf16 MXU inputs + approx reciprocal: tolerance sized for bf16 on O(1) outputs.
    assert jnp.max(jnp.abs(out - ref)) < 5e-2

    # Preferred low-traffic path: (B, N) key-validity mask (last two keys blocked).
    key_mask = jnp.ones((B, N), jnp.float32).at[:, N - 2:].set(0.0)
    out2 = jax.block_until_ready(
        global_graph_forward(hidden_states, key_mask, params))
    ref2 = _reference(hidden_states,
                      jnp.broadcast_to(key_mask[:, None, :], (B, N, N)), params)
    assert jnp.max(jnp.abs(out2 - ref2)) < 5e-2

    print("KERNEL_OK")
</pallas_src>

<mosaic_0001>
module attributes {stable_mosaic.version = 11 : i64} {
  func.func @_global_graph_kernel(%arg0: i32, %arg1: i32, %arg2: memref<1x8x32xf32, #tpu.memory_space<vmem>>, %arg3: memref<1x8x32xf32, #tpu.memory_space<vmem>>, %arg4: memref<1x8x8xbf16, #tpu.memory_space<vmem>>, %arg5: memref<32x128xbf16, #tpu.memory_space<vmem>>, %arg6: memref<32x256xbf16, #tpu.memory_space<vmem>>, %arg7: memref<1x128xf32, #tpu.memory_space<vmem>>, %arg8: memref<1x256xf32, #tpu.memory_space<vmem>>, %arg9: memref<1x8x32xf32, #tpu.memory_space<vmem>>, %arg10: memref<1x8x1xf32, #tpu.memory_space<vmem>>, %arg11: memref<1x8x1xf32, #tpu.memory_space<vmem>>, %arg12: memref<1x8x32xf32, #tpu.memory_space<vmem>>) attributes {dimension_semantics = [#tpu.dimension_semantics<parallel>, #tpu.dimension_semantics<arbitrary>], iteration_bounds = array<i64: 2, 1>, scalar_prefetch = 0 : i64, scratch_operands = 3 : i64, tpu.core_type = #tpu.core_type<tc>, window_params = [{transform_indices = @transform_0, window_bounds = array<i64: 1, 8, 32>}, {transform_indices = @transform_1, window_bounds = array<i64: 1, 8, 32>}, {transform_indices = @transform_2, window_bounds = array<i64: 1, 8, 8>}, {pipeline_mode = #tpu.pipeline_mode<synchronous>, transform_indices = @transform_3, window_bounds = array<i64: 32, 128>}, {pipeline_mode = #tpu.pipeline_mode<synchronous>, transform_indices = @transform_4, window_bounds = array<i64: 32, 256>}, {pipeline_mode = #tpu.pipeline_mode<synchronous>, transform_indices = @transform_5, window_bounds = array<i64: 1, 128>}, {pipeline_mode = #tpu.pipeline_mode<synchronous>, transform_indices = @transform_6, window_bounds = array<i64: 1, 256>}, {transform_indices = @transform_7, window_bounds = array<i64: 1, 8, 32>}]} {
    %c0_i32 = arith.constant 0 : i32
    %0 = arith.cmpi eq, %arg1, %c0_i32 : i32
    %1 = arith.extui %0 : i1 to i32
    %c0_i32_0 = arith.constant 0 : i32
    %2 = arith.cmpi ne, %1, %c0_i32_0 : i32
    scf.if %2 {
      %cst_45 = arith.constant 0xFF800000 : f32
      %57 = vector.broadcast %cst_45 : f32 to vector<1x8x1xf32>
      %c0_46 = arith.constant 0 : index
      %c0_47 = arith.constant 0 : index
      %c0_48 = arith.constant 0 : index
      %58 = vector.load %arg10[%c0_46, %c0_47, %c0_48] : memref<1x8x1xf32, #tpu.memory_space<vmem>>, vector<1x8x1xf32>
      tpu.vector_store %arg10[%c0_46, %c0_47, %c0_48], %57 {strides = array<i32>} : memref<1x8x1xf32, #tpu.memory_space<vmem>>, vector<1x8x1xf32>,
      %cst_49 = arith.constant 0.000000e+00 : f32
      %59 = vector.broadcast %cst_49 : f32 to vector<1x8x1xf32>
      %c0_50 = arith.constant 0 : index
      %c0_51 = arith.constant 0 : index
      %c0_52 = arith.constant 0 : index
      %60 = vector.load %arg11[%c0_50, %c0_51, %c0_52] : memref<1x8x1xf32, #tpu.memory_space<vmem>>, vector<1x8x1xf32>
      tpu.vector_store %arg11[%c0_50, %c0_51, %c0_52], %59 {strides = array<i32>} : memref<1x8x1xf32, #tpu.memory_space<vmem>>, vector<1x8x1xf32>,
      %cst_53 = arith.constant 0.000000e+00 : f32
      %61 = vector.broadcast %cst_53 : f32 to vector<1x8x32xf32>
      %c0_54 = arith.constant 0 : index
      %c0_55 = arith.constant 0 : index
      %c0_56 = arith.constant 0 : index
      %62 = vector.load %arg12[%c0_54, %c0_55, %c0_56] : memref<1x8x32xf32, #tpu.memory_space<vmem>>, vector<1x8x32xf32>
      tpu.vector_store %arg12[%c0_54, %c0_55, %c0_56], %61 {strides = array<i32>} : memref<1x8x32xf32, #tpu.memory_space<vmem>>, vector<1x8x32xf32>,
    } else {
    }
    %c0 = arith.constant 0 : index
    %c0_1 = arith.constant 0 : index
    %c0_2 = arith.constant 0 : index
    %3 = vector.load %arg2[%c0, %c0_1, %c0_2] : memref<1x8x32xf32, #tpu.memory_space<vmem>>, vector<1x8x32xf32>
    %4 = vector.shape_cast %3 : vector<1x8x32xf32> to vector<8x32xf32>
    %5 = arith.truncf %4 : vector<8x32xf32> to vector<8x32xbf16>
    %c0_3 = arith.constant 0 : index
    %c0_4 = arith.constant 0 : index
    %6 = vector.load %arg5[%c0_3, %c0_4] : memref<32x128xbf16, #tpu.memory_space<vmem>>, vector<32x128xbf16>
    %cst = arith.constant dense<0.000000e+00> : vector<8x128xf32>
    %7 = tpu.matmul %5, %6, %cst {dimension_numbers = #tpu.dot_dimension_numbers<[1], [0], [0], [1], [0, 0, 1, 1], [], []>} : vector<8x32xbf16>, vector<32x128xbf16>, vector<8x128xf32> -> vector<8x128xf32>
    %c0_5 = arith.constant 0 : index
    %c0_6 = arith.constant 0 : index
    %8 = vector.load %arg7[%c0_5, %c0_6] : memref<1x128xf32, #tpu.memory_space<vmem>>, vector<1x128xf32>
    %9 = vector.broadcast %8 : vector<1x128xf32> to vector<8x128xf32>
    %10 = arith.addf %7, %9 : vector<8x128xf32>
    %11 = vector.shape_cast %10 : vector<8x128xf32> to vector<1x8x128xf32>
    %12 = arith.truncf %11 : vector<1x8x128xf32> to vector<1x8x128xbf16>
    %c0_7 = arith.constant 0 : index
    %c0_8 = arith.constant 0 : index
    %c0_9 = arith.constant 0 : index
    %13 = vector.load %arg3[%c0_7, %c0_8, %c0_9] : memref<1x8x32xf32, #tpu.memory_space<vmem>>, vector<1x8x32xf32>
    %14 = vector.shape_cast %13 : vector<1x8x32xf32> to vector<8x32xf32>
    %15 = arith.truncf %14 : vector<8x32xf32> to vector<8x32xbf16>
    %c0_10 = arith.constant 0 : index
    %c0_11 = arith.constant 0 : index
    %16 = vector.load %arg6[%c0_10, %c0_11] : memref<32x256xbf16, #tpu.memory_space<vmem>>, vector<32x256xbf16>
    %cst_12 = arith.constant dense<0.000000e+00> : vector<8x256xf32>
    %17 = tpu.matmul %15, %16, %cst_12 {dimension_numbers = #tpu.dot_dimension_numbers<[1], [0], [0], [1], [0, 0, 1, 1], [], []>} : vector<8x32xbf16>, vector<32x256xbf16>, vector<8x256xf32> -> vector<8x256xf32>
    %c0_13 = arith.constant 0 : index
    %c0_14 = arith.constant 0 : index
    %18 = vector.load %arg8[%c0_13, %c0_14] : memref<1x256xf32, #tpu.memory_space<vmem>>, vector<1x256xf32>
    %19 = vector.broadcast %18 : vector<1x256xf32> to vector<8x256xf32>
    %20 = arith.addf %17, %19 : vector<8x256xf32>
    %21 = vector.shape_cast %20 : vector<8x256xf32> to vector<1x8x256xf32>
    %22 = vector.extract_strided_slice %21 {offsets = [0, 0, 0], sizes = [1, 8, 128], strides = [1, 1, 1]} : vector<1x8x256xf32> to vector<1x8x128xf32>
    %23 = arith.truncf %22 : vector<1x8x128xf32> to vector<1x8x128xbf16>
    %24 = vector.extract_strided_slice %21 {offsets = [0, 0, 128], sizes = [1, 8, 32], strides = [1, 1, 1]} : vector<1x8x256xf32> to vector<1x8x32xf32>
    %25 = arith.truncf %24 : vector<1x8x32xf32> to vector<1x8x32xbf16>
    "tpu.trace_start"() <{level = 10 : i32, message = "bqd,bkd->bqk"}> : () -> ()
    %cst_15 = arith.constant dense<0.000000e+00> : vector<1x8x8xf32>
    %26 = tpu.matmul %12, %23, %cst_15 {dimension_numbers = #tpu.dot_dimension_numbers<[2], [2], [1], [1], [0, 0, 0, 1, 1, 1], [0], [0]>} : vector<1x8x128xbf16>, vector<1x8x128xbf16>, vector<1x8x8xf32> -> vector<1x8x8xf32>
    "tpu.trace_stop"() : () -> ()
    %c0_16 = arith.constant 0 : index
    %c0_17 = arith.constant 0 : index
    %c0_18 = arith.constant 0 : index
    %27 = vector.load %arg4[%c0_16, %c0_17, %c0_18] : memref<1x8x8xbf16, #tpu.memory_space<vmem>>, vector<1x8x8xbf16>
    %28 = arith.extf %27 : vector<1x8x8xbf16> to vector<1x8x8xf32>
    %29 = arith.addf %26, %28 : vector<1x8x8xf32>
    %c0_19 = arith.constant 0 : index
    %c0_20 = arith.constant 0 : index
    %c0_21 = arith.constant 0 : index
    %30 = vector.load %arg10[%c0_19, %c0_20, %c0_21] : memref<1x8x1xf32, #tpu.memory_space<vmem>>, vector<1x8x1xf32>
    %cst_22 = arith.constant dense<0xFF800000> : vector<1x8xf32>
    %31 = vector.multi_reduction <maximumf>, %29, %cst_22 [2] : vector<1x8x8xf32> to vector<1x8xf32>
    %32 = vector.shape_cast %31 : vector<1x8xf32> to vector<1x8x1xf32>
    %33 = arith.maximumf %30, %32 : vector<1x8x1xf32>
    %c0_23 = arith.constant 0 : index
    %c0_24 = arith.constant 0 : index
    %c0_25 = arith.constant 0 : index
    %34 = vector.load %arg10[%c0_23, %c0_24, %c0_25] : memref<1x8x1xf32, #tpu.memory_space<vmem>>, vector<1x8x1xf32>
    %35 = arith.subf %34, %33 : vector<1x8x1xf32>
    %36 = math.exp %35 : vector<1x8x1xf32>
    %37 = vector.broadcast %33 : vector<1x8x1xf32> to vector<1x8x8xf32>
    %38 = arith.subf %29, %37 : vector<1x8x8xf32>
    %39 = math.exp %38 : vector<1x8x8xf32>
    %c0_26 = arith.constant 0 : index
    %c0_27 = arith.constant 0 : index
    %c0_28 = arith.constant 0 : index
    %40 = vector.load %arg11[%c0_26, %c0_27, %c0_28] : memref<1x8x1xf32, #tpu.memory_space<vmem>>, vector<1x8x1xf32>
    %41 = arith.mulf %36, %40 : vector<1x8x1xf32>
    %cst_29 = arith.constant dense<0.000000e+00> : vector<1x8xf32>
    %42 = vector.multi_reduction <add>, %39, %cst_29 [2] : vector<1x8x8xf32> to vector<1x8xf32>
    %43 = vector.shape_cast %42 : vector<1x8xf32> to vector<1x8x1xf32>
    %44 = arith.addf %41, %43 : vector<1x8x1xf32>
    %c0_30 = arith.constant 0 : index
    %c0_31 = arith.constant 0 : index
    %c0_32 = arith.constant 0 : index
    %45 = vector.load %arg11[%c0_30, %c0_31, %c0_32] : memref<1x8x1xf32, #tpu.memory_space<vmem>>, vector<1x8x1xf32>
    tpu.vector_store %arg11[%c0_30, %c0_31, %c0_32], %44 {strides = array<i32>} : memref<1x8x1xf32, #tpu.memory_space<vmem>>, vector<1x8x1xf32>,
    %c0_33 = arith.constant 0 : index
    %c0_34 = arith.constant 0 : index
    %c0_35 = arith.constant 0 : index
    %46 = vector.load %arg12[%c0_33, %c0_34, %c0_35] : memref<1x8x32xf32, #tpu.memory_space<vmem>>, vector<1x8x32xf32>
    %47 = vector.broadcast %36 : vector<1x8x1xf32> to vector<1x8x32xf32>
    %48 = arith.mulf %47, %46 : vector<1x8x32xf32>
    %49 = arith.truncf %39 : vector<1x8x8xf32> to vector<1x8x8xbf16>
    "tpu.trace_start"() <{level = 10 : i32, message = "bqk,bkd->bqd"}> : () -> ()
    %cst_36 = arith.constant dense<0.000000e+00> : vector<1x8x32xf32>
    %50 = tpu.matmul %49, %25, %cst_36 {dimension_numbers = #tpu.dot_dimension_numbers<[2], [1], [1], [2], [0, 0, 0, 1, 1, 2], [0], [0]>} : vector<1x8x8xbf16>, vector<1x8x32xbf16>, vector<1x8x32xf32> -> vector<1x8x32xf32>
    "tpu.trace_stop"() : () -> ()
    %51 = arith.addf %48, %50 : vector<1x8x32xf32>
    %c0_37 = arith.constant 0 : index
    %c0_38 = arith.constant 0 : index
    %c0_39 = arith.constant 0 : index
    %52 = vector.load %arg12[%c0_37, %c0_38, %c0_39] : memref<1x8x32xf32, #tpu.memory_space<vmem>>, vector<1x8x32xf32>
    tpu.vector_store %arg12[%c0_37, %c0_38, %c0_39], %51 {strides = array<i32>} : memref<1x8x32xf32, #tpu.memory_space<vmem>>, vector<1x8x32xf32>,
    %c0_40 = arith.constant 0 : index
    %c0_41 = arith.constant 0 : index
    %c0_42 = arith.constant 0 : index
    %53 = vector.load %arg10[%c0_40, %c0_41, %c0_42] : memref<1x8x1xf32, #tpu.memory_space<vmem>>, vector<1x8x1xf32>
    tpu.vector_store %arg10[%c0_40, %c0_41, %c0_42], %33 {strides = array<i32>} : memref<1x8x1xf32, #tpu.memory_space<vmem>>, vector<1x8x1xf32>,
    %c0_i32_43 = arith.constant 0 : i32
    %54 = arith.cmpi eq, %arg1, %c0_i32_43 : i32
    %55 = arith.extui %54 : i1 to i32
    %c0_i32_44 = arith.constant 0 : i32
    %56 = arith.cmpi ne, %55, %c0_i32_44 : i32
    scf.if %56 {
      %c0_45 = arith.constant 0 : index
      %c0_46 = arith.constant 0 : index
      %c0_47 = arith.constant 0 : index
      %57 = vector.load %arg12[%c0_45, %c0_46, %c0_47] : memref<1x8x32xf32, #tpu.memory_space<vmem>>, vector<1x8x32xf32>
      %c0_48 = arith.constant 0 : index
      %c0_49 = arith.constant 0 : index
      %c0_50 = arith.constant 0 : index
      %58 = vector.load %arg11[%c0_48, %c0_49, %c0_50] : memref<1x8x1xf32, #tpu.memory_space<vmem>>, vector<1x8x1xf32>
      %59 = tpu.reciprocal %58 {approx = true} : vector<1x8x1xf32> -> vector<1x8x1xf32>
      %60 = vector.broadcast %59 : vector<1x8x1xf32> to vector<1x8x32xf32>
      %61 = arith.mulf %57, %60 : vector<1x8x32xf32>
      %c0_51 = arith.constant 0 : index
      %c0_52 = arith.constant 0 : index
      %c0_53 = arith.constant 0 : index
      %62 = vector.load %arg9[%c0_51, %c0_52, %c0_53] : memref<1x8x32xf32, #tpu.memory_space<vmem>>, vector<1x8x32xf32>
      tpu.vector_store %arg9[%c0_51, %c0_52, %c0_53], %61 {strides = array<i32>} : memref<1x8x32xf32, #tpu.memory_space<vmem>>, vector<1x8x32xf32>,
    } else {
    }
    return
  }
  func.func @transform_0(%arg0: i32, %arg1: i32) -> (i32, i32, i32) {
    %c0_i32 = arith.constant 0 : i32
    %c0_i32_0 = arith.constant 0 : i32
    %c0_i32_1 = arith.constant 0 : i32
    return %arg0, %c0_i32, %c0_i32_0 : i32, i32, i32
  }
  func.func @transform_1(%arg0: i32, %arg1: i32) -> (i32, i32, i32) {
    %c0_i32 = arith.constant 0 : i32
    %c0_i32_0 = arith.constant 0 : i32
    return %arg0, %arg1, %c0_i32 : i32, i32, i32
  }
  func.func @transform_2(%arg0: i32, %arg1: i32) -> (i32, i32, i32) {
    %c0_i32 = arith.constant 0 : i32
    %c0_i32_0 = arith.constant 0 : i32
    return %arg0, %c0_i32, %arg1 : i32, i32, i32
  }
  func.func @transform_3(%arg0: i32, %arg1: i32) -> (i32, i32) {
    %c0_i32 = arith.constant 0 : i32
    %c0_i32_0 = arith.constant 0 : i32
    %c0_i32_1 = arith.constant 0 : i32
    return %c0_i32, %c0_i32_0 : i32, i32
  }
  func.func @transform_4(%arg0: i32, %arg1: i32) -> (i32, i32) {
    %c0_i32 = arith.constant 0 : i32
    %c0_i32_0 = arith.constant 0 : i32
    %c0_i32_1 = arith.constant 0 : i32
    return %c0_i32, %c0_i32_0 : i32, i32
  }
  func.func @transform_5(%arg0: i32, %arg1: i32) -> (i32, i32) {
    %c0_i32 = arith.constant 0 : i32
    %c0_i32_0 = arith.constant 0 : i32
    %c0_i32_1 = arith.constant 0 : i32
    return %c0_i32, %c0_i32_0 : i32, i32
  }
  func.func @transform_6(%arg0: i32, %arg1: i32) -> (i32, i32) {
    %c0_i32 = arith.constant 0 : i32
    %c0_i32_0 = arith.constant 0 : i32
    %c0_i32_1 = arith.constant 0 : i32
    return %c0_i32, %c0_i32_0 : i32, i32
  }
  func.func @transform_7(%arg0: i32, %arg1: i32) -> (i32, i32, i32) {
    %c0_i32 = arith.constant 0 : i32
    %c0_i32_0 = arith.constant 0 : i32
    %c0_i32_1 = arith.constant 0 : i32
    return %arg0, %c0_i32, %c0_i32_0 : i32, i32, i32
  }
}

</mosaic_0001>

<llo_original>
// kernel: tpu_custom_call.1
$region0: #{tpu_custom_call.1}
  #allocation0 [shape = 'u32[]', space=smem, size = 0x4, offset = 0x4, fixed_abs, tag = 'smem constant byte address 0x4 - core index']
  #allocation1 [shape = 'u32[144,128]{1,0:T(1,128)}', space=vmem, size = 0x12000, scoped, tag = 'internal scratch']
  #allocation2 [shape = 'f32[1,8,1]{2,1,0:T(8,128)}', space=vmem, size = 0x1000, scoped, tag = 'scratch operand']
  #allocation3 [shape = 'f32[1,8,1]{2,1,0:T(8,128)}', space=vmem, size = 0x1000, scoped, tag = 'scratch operand']
  #allocation4 [shape = 'f32[1,8,32]{2,1,0:T(8,128)}', space=vmem, size = 0x1000, scoped, tag = 'scratch operand']
  %s0 = inlined_call_operand.hbm [shape: f32[2,8,32], index: 0, kind: input, shape index: {}]
  %s1 = inlined_call_operand.hbm [shape: f32[2,8,32], index: 1, kind: input, shape index: {}]
  %s2 = inlined_call_operand.hbm [shape: bf16[2,8,8], index: 2, kind: input, shape index: {}]
  %s3 = inlined_call_operand.hbm [shape: bf16[32,128], index: 3, kind: input, shape index: {}]
  %s4 = inlined_call_operand.hbm [shape: bf16[32,256], index: 4, kind: input, shape index: {}]
  %s5 = inlined_call_operand.vmem [shape: f32[1,128], index: 5, kind: input, shape index: {}]
  %s6 = inlined_call_operand.vmem [shape: f32[1,256], index: 6, kind: input, shape index: {}]
  %s7 = inlined_call_operand.hbm [shape: f32[2,8,32], index: 7, kind: output, shape index: {}]
  %s8 = sld [smem:[#allocation0]]
  $region89: #{tpu_custom_call.1} parent=0
    _
  %s10 = ssub.s32 1, %s8
  %s11 = scalar_select 0, %s10, %s8
  $region1: #{tpu_custom_call.1} parent=0
    #allocation5 [shape = 'u8[8192]{0}', space=vmem, size = 0x2000, scoped, tag = 'input window, operand 0']
    #allocation6 [shape = 's32[2]{0}', space=sflag, size = 0x8, scoped, tag = 'scoped memory for tpu_custom_call.1']
    #allocation7 [shape = 's32[2]{0}', space=sflag, size = 0x8, scoped, tag = 'scoped memory for tpu_custom_call.1']
    #allocation8 [shape = 'u8[8192]{0}', space=vmem, size = 0x2000, scoped, tag = 'input window, operand 1']
    #allocation9 [shape = 's32[2]{0}', space=sflag, size = 0x8, scoped, tag = 'scoped memory for tpu_custom_call.1']
    #allocation10 [shape = 'u8[4096]{0}', space=vmem, size = 0x1000, scoped, tag = 'input window, operand 2']
    #allocation11 [shape = 'u8[8192]{0}', space=vmem, size = 0x2000, scoped, tag = 'input window, operand 3, single buffered']
    #allocation12 [shape = 's32[1]{0}', space=sflag, size = 0x4, scoped, tag = 'scoped memory for tpu_custom_call.1']
    #allocation13 [shape = 'u8[16384]{0}', space=vmem, size = 0x4000, scoped, tag = 'input window, operand 4, single buffered']
    #allocation14 [shape = 'u8[8192]{0}', space=vmem, size = 0x2000, scoped, tag = 'output window, operand 0']
    %12 = vsyncpa [#allocation6], 0
    %s13 = scalar_lea.sflag [#allocation6], 1
    %14 = vsyncpa %s13, 0
    %15 = vsyncpa [#allocation9], 0
    %s16 = scalar_lea.sflag [#allocation9], 1
    %17 = vsyncpa %s16, 0
    %18 = vsyncpa [#allocation12], 0
    %19 = vsyncpa [#allocation7], 0
    %s20 = scalar_lea.sflag [#allocation7], 1
    %21 = vsyncpa %s20, 0
    loop: start=0, step=1, limit=4
    $region2: #{tpu_custom_call.1} parent=1 // loop_pre_header
      _
    $region3: #{tpu_custom_call.1} parent=1 // loop_header
      %s23 = sphi 0, %s27
      %p24 = scmp.ge.s32.totalorder %s23, 4
      %s30 = sphi 0, %s42
      %s31 = sphi 0, %s38
      %s32 = sphi 0, %s30
      %s33 = sphi 0, %s31
      %s34 = sphi 0, %s32
      %s35 = sphi 0, %s33
      %s45 = sphi 0, %s47
      %s48 = sphi 0, %s45
      %s49 = sphi 0, %s48
      %s65 = sphi 0, %s49
      %s73 = sphi 0, %s75
      %s76 = sphi 0, %s73
      %s77 = sphi 0, %s76
      %s93 = sphi 0, %s77
      %s101 = sphi 0, %s103
      %s104 = sphi 0, %s101
      %s105 = sphi 0, %s104
      %s121 = sphi 0, %s105
      %s125 = sphi 0, %s125
      %s127 = sphi 0, %s125
      %s128 = sphi 0, %s127
      %s142 = sphi 0, %s128
      %s146 = sphi 0, %s146
      %s148 = sphi 0, %s146
      %s149 = sphi 0, %s148
      %s163 = sphi 0, %s149
      %s167 = sphi 0, %s167
      %s169 = sphi 0, %s167
      %s170 = sphi 0, %s169
      %s184 = sphi 0, %s170
      %s188 = sphi 0, %s188
      %s190 = sphi 0, %s188
      %s191 = sphi 0, %s190
      %s205 = sphi 0, %s191
      %s211 = sphi 0, %s213
      %s214 = sphi 0, %s211
      %s215 = sphi 0, %s214
      %s231 = sphi 0, %s215
    $region4: #{tpu_custom_call.1} parent=1 // loop_header_branch
      %26 = sbr.rel (%p24) target = $region8
    $region5: #{tpu_custom_call.1} parent=1 // loop_body
      %s28 = ssub.s32 %s23, 1
      %s29 = ssub.s32 %s23, 2
      %s36 = sadd.s32 1, %s31
      %p37 = scmp.ge.s32.totalorder %s36, 1
      %s38 = scalar_select %p37, 0, %s36
      %s39 = sadd.s32 1, %s30
      %s40 = scalar_select %p37, %s39, %s30
      %p41 = scmp.ge.s32.totalorder %s40, 2
      %s42 = scalar_select %p41, 0, %s40
      %s43 = ssub.s32 %s30, %s42
      %p44 = scmp.eq.s32.totalorder %s43, 0
      %s46 = sadd.s32 %s45, 1
      %s47 = scalar_select %p44, %s45, %s46
      %p50 = pneg %p44
      %p51 = scmp.eq.s32.totalorder %s23, 1
      %p52 = por %p50, %p51
      %p53 = scmp.ne.s32.totalorder %s45, %s48
      %p54 = scmp.eq.s32.totalorder %s23, 0
      %p55 = por %p53, %p54
      %p56 = scmp.ne.s32.totalorder %s45, %s48
      %p57 = scmp.eq.s32.totalorder %s28, 1
      %p58 = por %p56, %p57
      %p59 = scmp.ne.s32.totalorder %s48, %s49
      %p60 = scmp.eq.s32.totalorder %s28, 0
      %p61 = por %p59, %p60
      %p62 = scmp.ne.s32.totalorder %s48, %s49
      %p63 = scmp.eq.s32.totalorder %s29, 1
      %p64 = por %p62, %p63
      %p66 = scmp.ne.s32.totalorder %s49, %s65
      %p67 = scmp.eq.s32.totalorder %s29, 0
      %p68 = por %p66, %p67
      %s69 = ssub.s32 %s30, %s42
      %s70 = ssub.s32 %s31, %s38
      %s71 = sor.u32 %s69, %s70
      %p72 = scmp.eq.s32.totalorder %s71, 0
      %s74 = sadd.s32 %s73, 1
      %s75 = scalar_select %p72, %s73, %s74
      %p78 = pneg %p72
      %p79 = scmp.eq.s32.totalorder %s23, 1
      %p80 = por %p78, %p79
      %p81 = scmp.ne.s32.totalorder %s73, %s76
      %p82 = scmp.eq.s32.totalorder %s23, 0
      %p83 = por %p81, %p82
      %p84 = scmp.ne.s32.totalorder %s73, %s76
      %p85 = scmp.eq.s32.totalorder %s28, 1
      %p86 = por %p84, %p85
      %p87 = scmp.ne.s32.totalorder %s76, %s77
      %p88 = scmp.eq.s32.totalorder %s28, 0
      %p89 = por %p87, %p88
      %p90 = scmp.ne.s32.totalorder %s76, %s77
      %p91 = scmp.eq.s32.totalorder %s29, 1
      %p92 = por %p90, %p91
      %p94 = scmp.ne.s32.totalorder %s77, %s93
      %p95 = scmp.eq.s32.totalorder %s29, 0
      %p96 = por %p94, %p95
      %s97 = ssub.s32 %s30, %s42
      %s98 = ssub.s32 %s31, %s38
      %s99 = sor.u32 %s97, %s98
      %p100 = scmp.eq.s32.totalorder %s99, 0
      %s102 = sadd.s32 %s101, 1
      %s103 = scalar_select %p100, %s101, %s102
      %p106 = pneg %p100
      %p107 = scmp.eq.s32.totalorder %s23, 1
      %p108 = por %p106, %p107
      %p109 = scmp.ne.s32.totalorder %s101, %s104
      %p110 = scmp.eq.s32.totalorder %s23, 0
      %p111 = por %p109, %p110
      %p112 = scmp.ne.s32.totalorder %s101, %s104
      %p113 = scmp.eq.s32.totalorder %s28, 1
      %p114 = por %p112, %p113
      %p115 = scmp.ne.s32.totalorder %s104, %s105
      %p116 = scmp.eq.s32.totalorder %s28, 0
      %p117 = por %p115, %p116
      %p118 = scmp.ne.s32.totalorder %s104, %s105
      %p119 = scmp.eq.s32.totalorder %s29, 1
      %p120 = por %p118, %p119
      %p122 = scmp.ne.s32.totalorder %s105, %s121
      %p123 = scmp.eq.s32.totalorder %s29, 0
      %p124 = por %p122, %p123
      %s126 = sadd.s32 %s125, 1
      %p129 = scmp.eq.s32.totalorder %s23, 1
      %p130 = scmp.ne.s32.totalorder %s125, %s127
      %p131 = scmp.eq.s32.totalorder %s23, 0
      %p132 = por %p130, %p131
      %p133 = scmp.ne.s32.totalorder %s125, %s127
      %p134 = scmp.eq.s32.totalorder %s28, 1
      %p135 = por %p133, %p134
      %p136 = scmp.ne.s32.totalorder %s127, %s128
      %p137 = scmp.eq.s32.totalorder %s28, 0
      %p138 = por %p136, %p137
      %p139 = scmp.ne.s32.totalorder %s127, %s128
      %p140 = scmp.eq.s32.totalorder %s29, 1
      %p141 = por %p139, %p140
      %p143 = scmp.ne.s32.totalorder %s128, %s142
      %p144 = scmp.eq.s32.totalorder %s29, 0
      %p145 = por %p143, %p144
      %s147 = sadd.s32 %s146, 1
      %p150 = scmp.eq.s32.totalorder %s23, 1
      %p151 = scmp.ne.s32.totalorder %s146, %s148
      %p152 = scmp.eq.s32.totalorder %s23, 0
      %p153 = por %p151, %p152
      %p154 = scmp.ne.s32.totalorder %s146, %s148
      %p155 = scmp.eq.s32.totalorder %s28, 1
      %p156 = por %p154, %p155
      %p157 = scmp.ne.s32.totalorder %s148, %s149
      %p158 = scmp.eq.s32.totalorder %s28, 0
      %p159 = por %p157, %p158
      %p160 = scmp.ne.s32.totalorder %s148, %s149
      %p161 = scmp.eq.s32.totalorder %s29, 1
      %p162 = por %p160, %p161
      %p164 = scmp.ne.s32.totalorder %s149, %s163
      %p165 = scmp.eq.s32.totalorder %s29, 0
      %p166 = por %p164, %p165
      %s168 = sadd.s32 %s167, 1
      %p171 = scmp.eq.s32.totalorder %s23, 1
      %p172 = scmp.ne.s32.totalorder %s167, %s169
      %p173 = scmp.eq.s32.totalorder %s23, 0
      %p174 = por %p172, %p173
      %p175 = scmp.ne.s32.totalorder %s167, %s169
      %p176 = scmp.eq.s32.totalorder %s28, 1
      %p177 = por %p175, %p176
      %p178 = scmp.ne.s32.totalorder %s169, %s170
      %p179 = scmp.eq.s32.totalorder %s28, 0
      %p180 = por %p178, %p179
      %p181 = scmp.ne.s32.totalorder %s169, %s170
      %p182 = scmp.eq.s32.totalorder %s29, 1
      %p183 = por %p181, %p182
      %p185 = scmp.ne.s32.totalorder %s170, %s184
      %p186 = scmp.eq.s32.totalorder %s29, 0
      %p187 = por %p185, %p186
      %s189 = sadd.s32 %s188, 1
      %p192 = scmp.eq.s32.totalorder %s23, 1
      %p193 = scmp.ne.s32.totalorder %s188, %s190
      %p194 = scmp.eq.s32.totalorder %s23, 0
      %p195 = por %p193, %p194
      %p196 = scmp.ne.s32.totalorder %s188, %s190
      %p197 = scmp.eq.s32.totalorder %s28, 1
      %p198 = por %p196, %p197
      %p199 = scmp.ne.s32.totalorder %s190, %s191
      %p200 = scmp.eq.s32.totalorder %s28, 0
      %p201 = por %p199, %p200
      %p202 = scmp.ne.s32.totalorder %s190, %s191
      %p203 = scmp.eq.s32.totalorder %s29, 1
      %p204 = por %p202, %p203
      %p206 = scmp.ne.s32.totalorder %s191, %s205
      %p207 = scmp.eq.s32.totalorder %s29, 0
      %p208 = por %p206, %p207
      %s209 = ssub.s32 %s30, %s42
      %p210 = scmp.eq.s32.totalorder %s209, 0
      %s212 = sadd.s32 %s211, 1
      %s213 = scalar_select %p210, %s211, %s212
      %p216 = pneg %p210
      %p217 = scmp.eq.s32.totalorder %s23, 1
      %p218 = por %p216, %p217
      %p219 = scmp.ne.s32.totalorder %s211, %s214
      %p220 = scmp.eq.s32.totalorder %s23, 0
      %p221 = por %p219, %p220
      %p222 = scmp.ne.s32.totalorder %s211, %s214
      %p223 = scmp.eq.s32.totalorder %s28, 1
      %p224 = por %p222, %p223
      %p225 = scmp.ne.s32.totalorder %s214, %s215
      %p226 = scmp.eq.s32.totalorder %s28, 0
      %p227 = por %p225, %p226
      %p228 = scmp.ne.s32.totalorder %s214, %s215
      %p229 = scmp.eq.s32.totalorder %s29, 1
      %p230 = por %p228, %p229
      %p232 = scmp.ne.s32.totalorder %s215, %s231
      %p233 = scmp.eq.s32.totalorder %s29, 0
      %p234 = por %p232, %p233
      %p235 = scmp.le.s32.totalorder 1, %s23
      %p236 = scmp.lt.s32.totalorder %s23, 3
      %p237 = pnand %p235, %p236
      %p238 = pneg %p237
      // Predicated region
      $region9: #{tpu_custom_call.1} parent=5 // pred_check
        _
      $region10: #{tpu_custom_call.1} parent=5 // pred_check_branch
        %240 = sbr.rel (%p237) target = $region12
      $region11: #{tpu_custom_call.1} parent=5 // pred_region
        %s241 = ssub.s32 %s23, 1
        // Predicated region
        $region13: #{tpu_custom_call.1} parent=11 // pred_check
          %p242 = pneg %p138
        $region14: #{tpu_custom_call.1} parent=11 // pred_check_branch
          %244 = sbr.rel (%p242) target = $region16
        $region15: #{tpu_custom_call.1} parent=11 // pred_region
          %s246 = ssub.s32 256, 256
          %247 = vsyncadd [#allocation12], %s246
          %s248 = sshll.u32 [#allocation11], 4
          %s249 = int_to_ptr.vmem [resolvable:$true] %s248
          %254 = dma.hbm_to_vmem [thread:$0]  %s3, 256, %s249, [#allocation12], 64, 64, 4
        $region16: #{tpu_custom_call.1} parent=11 // pred_fallthru
          _
        // Predicated region
        $region17: #{tpu_custom_call.1} parent=11 // pred_check
          %p255 = pneg %p159
        $region18: #{tpu_custom_call.1} parent=11 // pred_check_branch
          %257 = sbr.rel (%p255) target = $region20
        $region19: #{tpu_custom_call.1} parent=11 // pred_region
          %s259 = ssub.s32 512, 512
          %260 = vsyncadd [#allocation12], %s259
          %s261 = sshll.u32 [#allocation13], 4
          %s262 = int_to_ptr.vmem [resolvable:$true] %s261
          %267 = dma.hbm_to_vmem [thread:$0]  %s4, 512, %s262, [#allocation12], 128, 128, 8
        $region20: #{tpu_custom_call.1} parent=11 // pred_fallthru
          _
        // Predicated region
        $region21: #{tpu_custom_call.1} parent=11 // pred_check
          %p268 = pneg %p180
        $region22: #{tpu_custom_call.1} parent=11 // pred_check_branch
          %270 = sbr.rel (%p268) target = $region24
        $region23: #{tpu_custom_call.1} parent=11 // pred_region
          _
        $region24: #{tpu_custom_call.1} parent=11 // pred_fallthru
          _
        // Predicated region
        $region25: #{tpu_custom_call.1} parent=11 // pred_check
          %p271 = pneg %p201
        $region26: #{tpu_custom_call.1} parent=11 // pred_check_branch
          %273 = sbr.rel (%p271) target = $region28
        $region27: #{tpu_custom_call.1} parent=11 // pred_region
          _
        $region28: #{tpu_custom_call.1} parent=11 // pred_fallthru
          _
      $region12: #{tpu_custom_call.1} parent=5 // pred_fallthru
        _
      %p274 = scmp.lt.s32.totalorder %s23, 2
      // Predicated region
      $region29: #{tpu_custom_call.1} parent=5 // pred_check
        %p275 = pneg %p274
      $region30: #{tpu_custom_call.1} parent=5 // pred_check_branch
        %277 = sbr.rel (%p275) target = $region32
      $region31: #{tpu_custom_call.1} parent=5 // pred_region
        // Predicated region
        $region33: #{tpu_custom_call.1} parent=31 // pred_check
          %p278 = pneg %p55
        $region34: #{tpu_custom_call.1} parent=31 // pred_check_branch
          %280 = sbr.rel (%p278) target = $region36
        $region35: #{tpu_custom_call.1} parent=31 // pred_region
          %s281 = sand.u32 %s45, 1
          %s282 = scalar_lea.sflag [#allocation6], %s281
          %s283 = sand.u32 %s45, 1
          %s284 = smul.addr %s283, 8
          %s285 = scalar_lea.vmem [#allocation5], %s284
          %s287 = ssub.s32 128, 128
          %288 = vsyncadd %s282, %s287
          %s289 = smul.addr %s30, 128
          %s290 = scalar_lea.hbm %s0, %s289
          %s292 = sshll.u32 %s285, 4
          %s293 = int_to_ptr.vmem [resolvable:$true] %s292
          %295 = dma.hbm_to_vmem [thread:$0]  %s290, 128, %s293, %s282
        $region36: #{tpu_custom_call.1} parent=31 // pred_fallthru
          _
        // Predicated region
        $region37: #{tpu_custom_call.1} parent=31 // pred_check
          %p296 = pneg %p83
        $region38: #{tpu_custom_call.1} parent=31 // pred_check_branch
          %298 = sbr.rel (%p296) target = $region40
        $region39: #{tpu_custom_call.1} parent=31 // pred_region
          %s299 = sand.u32 %s23, 1
          %s300 = scalar_lea.sflag [#allocation9], %s299
          %s301 = sand.u32 %s73, 1
          %s302 = smul.addr %s301, 8
          %s303 = scalar_lea.vmem [#allocation8], %s302
          %s305 = ssub.s32 128, 128
          %306 = vsyncadd %s300, %s305
          %s307 = sadd.s32 %s31, %s30
          %s308 = smul.addr %s307, 128
          %s309 = scalar_lea.hbm %s1, %s308
          %s311 = sshll.u32 %s303, 4
          %s312 = int_to_ptr.vmem [resolvable:$true] %s311
          %314 = dma.hbm_to_vmem [thread:$0]  %s309, 128, %s312, %s300
        $region40: #{tpu_custom_call.1} parent=31 // pred_fallthru
          _
        // Predicated region
        $region41: #{tpu_custom_call.1} parent=31 // pred_check
          %p315 = pneg %p111
        $region42: #{tpu_custom_call.1} parent=31 // pred_check_branch
          %317 = sbr.rel (%p315) target = $region44
        $region43: #{tpu_custom_call.1} parent=31 // pred_region
          %s318 = sand.u32 %s23, 1
          %s319 = scalar_lea.sflag [#allocation9], %s318
          %s320 = sand.u32 %s101, 1
          %s321 = smul.addr %s320, 4
          %s322 = scalar_lea.vmem [#allocation10], %s321
          %s324 = ssub.s32 64, 64
          %325 = vsyncadd %s319, %s324
          %s326 = sadd.s32 %s31, %s30
          %s327 = smul.addr %s326, 64
          %s328 = scalar_lea.hbm %s2, %s327
          %s330 = sshll.u32 %s322, 4
          %s331 = int_to_ptr.vmem [resolvable:$true] %s330
          %333 = dma.hbm_to_vmem [thread:$0]  %s328, 64, %s331, %s319
        $region44: #{tpu_custom_call.1} parent=31 // pred_fallthru
          _
      $region32: #{tpu_custom_call.1} parent=5 // pred_fallthru
        _
      %p334 = scmp.le.s32.totalorder 1, %s23
      %p335 = scmp.lt.s32.totalorder %s23, 3
      %p336 = pnand %p334, %p335
      %p337 = pneg %p336
      // Predicated region
      $region45: #{tpu_custom_call.1} parent=5 // pred_check
        _
      $region46: #{tpu_custom_call.1} parent=5 // pred_check_branch
        %339 = sbr.rel (%p336) target = $region48
      $region47: #{tpu_custom_call.1} parent=5 // pred_region
        %s340 = ssub.s32 %s23, 1
        %s341 = sand.u32 %s48, 1
        %s342 = scalar_lea.sflag [#allocation6], %s341
        %s343 = sand.u32 %s48, 1
        %s344 = smul.addr %s343, 8
        %s345 = scalar_lea.vmem [#allocation5], %s344
        // Predicated region
        $region49: #{tpu_custom_call.1} parent=47 // pred_check
          %p346 = pneg %p61
        $region50: #{tpu_custom_call.1} parent=47 // pred_check_branch
          %348 = sbr.rel (%p346) target = $region52
        $region51: #{tpu_custom_call.1} parent=47 // pred_region
          %349 = dma.done %s342, 128
        $region52: #{tpu_custom_call.1} parent=47 // pred_fallthru
          _
        %s350 = sand.u32 %s28, 1
        %s351 = scalar_lea.sflag [#allocation9], %s350
        %s352 = sand.u32 %s76, 1
        %s353 = smul.addr %s352, 8
        %s354 = scalar_lea.vmem [#allocation8], %s353
        // Predicated region
        $region53: #{tpu_custom_call.1} parent=47 // pred_check
          %p355 = pneg %p89
        $region54: #{tpu_custom_call.1} parent=47 // pred_check_branch
          %357 = sbr.rel (%p355) target = $region56
        $region55: #{tpu_custom_call.1} parent=47 // pred_region
          %358 = dma.done %s351, 128
        $region56: #{tpu_custom_call.1} parent=47 // pred_fallthru
          _
        %s359 = sand.u32 %s28, 1
        %s360 = scalar_lea.sflag [#allocation9], %s359
        %s361 = sand.u32 %s104, 1
        %s362 = smul.addr %s361, 4
        %s363 = scalar_lea.vmem [#allocation10], %s362
        // Predicated region
        $region57: #{tpu_custom_call.1} parent=47 // pred_check
          %p364 = pneg %p117
        $region58: #{tpu_custom_call.1} parent=47 // pred_check_branch
          %366 = sbr.rel (%p364) target = $region60
        $region59: #{tpu_custom_call.1} parent=47 // pred_region
          %367 = dma.done %s360, 64
        $region60: #{tpu_custom_call.1} parent=47 // pred_fallthru
          _
        // Predicated region
        $region61: #{tpu_custom_call.1} parent=47 // pred_check
          %p368 = pneg %p138
        $region62: #{tpu_custom_call.1} parent=47 // pred_check_branch
          %370 = sbr.rel (%p368) target = $region64
        $region63: #{tpu_custom_call.1} parent=47 // pred_region
          %371 = dma.done [#allocation12], 256
        $region64: #{tpu_custom_call.1} parent=47 // pred_fallthru
          _
        // Predicated region
        $region65: #{tpu_custom_call.1} parent=47 // pred_check
          %p372 = pneg %p159
        $region66: #{tpu_custom_call.1} parent=47 // pred_check_branch
          %374 = sbr.rel (%p372) target = $region68
        $region67: #{tpu_custom_call.1} parent=47 // pred_region
          %375 = dma.done [#allocation12], 512
        $region68: #{tpu_custom_call.1} parent=47 // pred_fallthru
          _
        %s376 = sand.u32 %s48, 1
        %s377 = scalar_lea.sflag [#allocation6], %s376
        %s378 = sand.u32 %s48, 1
        %s379 = smul.addr %s378, 8
        %s380 = scalar_lea.vmem [#allocation5], %s379
        %p381 = pneg %p61
        %p382 = pneg %p58
        %s383 = sand.u32 %s28, 1
        %s384 = scalar_lea.sflag [#allocation9], %s383
        %s385 = sand.u32 %s76, 1
        %s386 = smul.addr %s385, 8
        %s387 = scalar_lea.vmem [#allocation8], %s386
        %p388 = pneg %p89
        %p389 = pneg %p86
        %s390 = sand.u32 %s28, 1
        %s391 = scalar_lea.sflag [#allocation9], %s390
        %s392 = sand.u32 %s104, 1
        %s393 = smul.addr %s392, 4
        %s394 = scalar_lea.vmem [#allocation10], %s393
        %p395 = pneg %p117
        %p396 = pneg %p114
        %p397 = pneg %p138
        %p398 = pneg %p135
        %p399 = pneg %p159
        %p400 = pneg %p156
        %p401 = pneg %p180
        %p402 = pneg %p177
        %p403 = pneg %p201
        %p404 = pneg %p198
        %p405 = pneg %p227
        %p406 = pneg %p224
        %s407 = sand.u32 %s214, 1
        %s408 = scalar_lea.sflag [#allocation7], %s407
        %s409 = sand.u32 %s214, 1
        %s410 = smul.addr %s409, 8
        %s411 = scalar_lea.vmem [#allocation14], %s410
        %p413 = scmp.eq.s32.totalorder %s33, 0
        // Predicated region
        $region69: #{tpu_custom_call.1} parent=47 // pred_check
          %p414 = pneg %p413
        $region70: #{tpu_custom_call.1} parent=47 // pred_check_branch
          %416 = sbr.rel (%p414) target = $region72
        $region71: #{tpu_custom_call.1} parent=47 // pred_region
          %vm417 = vcmask 7168
          %418 = vst.msk [vmem:[#allocation2] sm:$0xff] %vm417, -inf
          %419 = vst.msk [vmem:[#allocation3] sm:$0xff] %vm417, 0.0
          %vm420 = vcmask 261120
          %421 = vst.msk [vmem:[#allocation4] sm:$0xff] %vm420, 0.0
        $region72: #{tpu_custom_call.1} parent=47 // pred_fallthru
          _
        %v422 = vld [vmem:[%s345] sm:$0xff]
        %v423 = vpack.c.bf16 %v422, %v422
        %v424 = vld [vmem:[#allocation11] sm:$0xf]
        %v425 = vld [vmem:[#allocation11 + $0x4] sm:$0xf]
        %v426 = vld [vmem:[#allocation11 + $0x8] sm:$0xf]
        %v427 = vld [vmem:[#allocation11 + $0xc] sm:$0xf]
        %v428 = vld [vmem:[%s5] sm:$0x1]
        %v430 = vlaneseq
        %v431 = vshrl.u32 %v430, 7
        %v432 = vsub.s32 0, %v431
        %v433 = vrot.slane %v428, %v432
        %v439 = vunpack.c.l.b16 %v424
        %v440 = vunpack.c.l.b16 %v425
        %v441 = vunpack.c.l.b16 %v426
        %v442 = vunpack.c.l.b16 %v427
        %v443 = vpack.c.b16 %v440, %v439
        %v444 = vpack.c.b16 %v442, %v441
        %vm447 = vcmask 261120
        %v449 = vsel %vm447, %v423, 0
        %451 = vmatprep.subr.bf16.mxu0 0
        %452 = vmatpush1.bf16.msra.mxu0 %v443
        %453 = vmatprep.subr.bf16.mxu0 0
        %454 = vmatpush1.bf16.msra.mxu0 %v444
        %455 = vmatprep.subr.bf16.mxu0 0
        %456 = vmatpush1.bf16.msra.mxu0 0
        %457 = vmatprep.subr.bf16.mxu0 0
        %458 = vmatpush1.bf16.msra.mxu0 0
        %459 = vmatprep.subr.bf16.mxu0 0
        %460 = vmatpush1.bf16.msra.mxu0 0
        %461 = vmatprep.subr.bf16.mxu0 0
        %462 = vmatpush1.bf16.msra.mxu0 0
        %463 = vmatprep.subr.bf16.mxu0 0
        %464 = vmatpush1.bf16.msra.mxu0 0
        %465 = vmatprep.subr.bf16.mxu0 0
        %466 = vmatpush1.bf16.msra.mxu0 0
        %467 = vmatprep.subr.bf16.mxu0 0
        %468 = vmatpush1.bf16.msra.mxu0 0
        %469 = vmatprep.subr.bf16.mxu0 0
        %470 = vmatpush1.bf16.msra.mxu0 0
        %471 = vmatprep.subr.bf16.mxu0 0
        %472 = vmatpush1.bf16.msra.mxu0 0
        %473 = vmatprep.subr.bf16.mxu0 0
        %474 = vmatpush1.bf16.msra.mxu0 0
        %475 = vmatprep.subr.bf16.mxu0 0
        %476 = vmatpush1.bf16.msra.mxu0 0
        %477 = vmatprep.subr.bf16.mxu0 0
        %478 = vmatpush1.bf16.msra.mxu0 0
        %479 = vmatprep.subr.bf16.mxu0 0
        %480 = vmatpush1.bf16.msra.mxu0 0
        %481 = vmatprep.subr.bf16.mxu0 0
        %482 = vmatpush1.bf16.msra.mxu0 0
        %483 = vmatprep.mubr.bf16.mxu0 0
        %484 = vmatmul.mubr.bf16.gmra.mrb[0].mxu0 %v449
        %v485 = vpop.f32.mrb[0].mxu0
        %v486 = vadd.f32 %v433, %v485
        %v487 = vpop.f32.mrb[0].mxu0
        %v488 = vpop.f32.mrb[0].mxu0
        %v489 = vpop.f32.mrb[0].mxu0
        %490 = vdwg.mxu0
        %v491 = vpack.c.bf16 %v486, %v486
        %v492 = vld [vmem:[%s354] sm:$0xff]
        %v493 = vpack.c.bf16 %v492, %v492
        %v494 = vld [vmem:[#allocation13] sm:$0xff]
        %v495 = vld [vmem:[#allocation13 + $0x8] sm:$0xff]
        %v496 = vld [vmem:[#allocation13 + $0x10] sm:$0xff]
        %v497 = vld [vmem:[#allocation13 + $0x18] sm:$0xff]
        %v498 = vld [vmem:[%s6] sm:$0x3]
        %v500 = vlaneseq
        %v501 = vshrl.u32 %v500, 7
        %v502 = vsub.s32 0, %v501
        %v503 = vrot.slane %v498, %v502
        %v504 = vlaneseq
        %v505 = vshrl.u32 %v504, 7
        %v506 = vsub.s32 1, %v505
        %v507 = vrot.slane %v498, %v506
        %v514 = vunpack.c.l.b16 %v494
        %v515 = vunpack.c.h.b16 %v494
        %v516 = vunpack.c.l.b16 %v495
        %v517 = vunpack.c.h.b16 %v495
        %v518 = vunpack.c.l.b16 %v496
        %v519 = vunpack.c.h.b16 %v496
        %v520 = vunpack.c.l.b16 %v497
        %v521 = vunpack.c.h.b16 %v497
        %v522 = vpack.c.b16 %v516, %v514
        %v523 = vpack.c.b16 %v517, %v515
        %v524 = vpack.c.b16 %v520, %v518
        %v525 = vpack.c.b16 %v521, %v519
        %v531 = vsel %vm447, %v493, 0
        %533 = vmatprep.subr.bf16.mxu0 %v523
        %534 = vmatpush1.bf16.msra.mxu0 %v522
        %535 = vmatprep.subr.bf16.mxu0 %v525
        %536 = vmatpush1.bf16.msra.mxu0 %v524
        %537 = vmatprep.subr.bf16.mxu0 0
        %538 = vmatpush1.bf16.msra.mxu0 0
        %539 = vmatprep.subr.bf16.mxu0 0
        %540 = vmatpush1.bf16.msra.mxu0 0
        %541 = vmatprep.subr.bf16.mxu0 0
        %542 = vmatpush1.bf16.msra.mxu0 0
        %543 = vmatprep.subr.bf16.mxu0 0
        %544 = vmatpush1.bf16.msra.mxu0 0
        %545 = vmatprep.subr.bf16.mxu0 0
        %546 = vmatpush1.bf16.msra.mxu0 0
        %547 = vmatprep.subr.bf16.mxu0 0
        %548 = vmatpush1.bf16.msra.mxu0 0
        %549 = vmatprep.subr.bf16.mxu0 0
        %550 = vmatpush1.bf16.msra.mxu0 0
        %551 = vmatprep.subr.bf16.mxu0 0
        %552 = vmatpush1.bf16.msra.mxu0 0
        %553 = vmatprep.subr.bf16.mxu0 0
        %554 = vmatpush1.bf16.msra.mxu0 0
        %555 = vmatprep.subr.bf16.mxu0 0
        %556 = vmatpush1.bf16.msra.mxu0 0
        %557 = vmatprep.subr.bf16.mxu0 0
        %558 = vmatpush1.bf16.msra.mxu0 0
        %559 = vmatprep.subr.bf16.mxu0 0
        %560 = vmatpush1.bf16.msra.mxu0 0
        %561 = vmatprep.subr.bf16.mxu0 0
        %562 = vmatpush1.bf16.msra.mxu0 0
        %563 = vmatprep.subr.bf16.mxu0 0
        %564 = vmatpush1.bf16.msra.mxu0 0
        %565 = vmatprep.mubr.bf16.mxu0 0
        %566 = vmatmul.mubr.bf16.gmra.mrb[0].mxu0 %v531
        %v567 = vpop.f32.mrb[0].mxu0
        %v568 = vadd.f32 %v503, %v567
        %v569 = vpop.f32.mrb[0].mxu0
        %v570 = vadd.f32 %v507, %v569
        %v571 = vpop.f32.mrb[0].mxu0
        %v572 = vpop.f32.mrb[0].mxu0
        %573 = vdwg.mxu0
        %v574 = vpack.c.bf16 %v568, %v568
        %v575 = vpack.c.bf16 %v570, %v570
        %v576 = vld [vmem:[%s363] sm:$0xf]
        %v577 = vunpack.c.l.bf16 %v576
        %578 = vmatprep.subr.bf16.mxu0 0
        %579 = vmatpush1.bf16.xpose.msra.mxu0 %v574
        %580 = vmatprep.subr.bf16.mxu0 0
        %581 = vmatpush1.bf16.xpose.msra.mxu0 0
        %582 = vmatprep.subr.bf16.mxu0 0
        %583 = vmatpush1.bf16.xpose.msra.mxu0 0
        %584 = vmatprep.subr.bf16.mxu0 0
        %585 = vmatpush1.bf16.xpose.msra.mxu0 0
        %586 = vmatprep.subr.bf16.mxu0 0
        %587 = vmatpush1.bf16.xpose.msra.mxu0 0
        %588 = vmatprep.subr.bf16.mxu0 0
        %589 = vmatpush1.bf16.xpose.msra.mxu0 0
        %590 = vmatprep.subr.bf16.mxu0 0
        %591 = vmatpush1.bf16.xpose.msra.mxu0 0
        %592 = vmatprep.subr.bf16.mxu0 0
        %593 = vmatpush1.bf16.xpose.msra.mxu0 0
        %594 = vmatprep.subr.bf16.mxu0 0
        %595 = vmatpush1.bf16.xpose.msra.mxu0 0
        %596 = vmatprep.subr.bf16.mxu0 0
        %597 = vmatpush1.bf16.xpose.msra.mxu0 0
        %598 = vmatprep.subr.bf16.mxu0 0
        %599 = vmatpush1.bf16.xpose.msra.mxu0 0
        %600 = vmatprep.subr.bf16.mxu0 0
        %601 = vmatpush1.bf16.xpose.msra.mxu0 0
        %602 = vmatprep.subr.bf16.mxu0 0
        %603 = vmatpush1.bf16.xpose.msra.mxu0 0
        %604 = vmatprep.subr.bf16.mxu0 0
        %605 = vmatpush1.bf16.xpose.msra.mxu0 0
        %606 = vmatprep.subr.bf16.mxu0 0
        %607 = vmatpush1.bf16.xpose.msra.mxu0 0
        %608 = vmatprep.subr.bf16.mxu0 0
        %609 = vmatpush1.bf16.xpose.msra.mxu0 0
        %610 = vmatprep.mubr.bf16.mxu0 0
        %611 = vmatmul.mubr.bf16.gmra.mrb[0].mxu0 %v491
        %v612 = vpop.f32.mrb[0].mxu0
        %v613 = vadd.f32 %v577, %v612
        %v614 = vpop.f32.mrb[0].mxu0
        %v615 = vpop.f32.mrb[0].mxu0
        %v616 = vpop.f32.mrb[0].mxu0
        %617 = vdwg.mxu0
        %v618 = vld [vmem:[#allocation2] sm:$0xff]
        %vm619 = vcmask 64512
        %v620 = vsel %vm619, %v613, -inf
        %621 = vmax.xlane.f32.xlu0 %v620
        %v622 = vpop.xlane.xlu0 %621
        %v623 = vmax.f32 %v618, %v622
        %v624 = vsub.f32 %v618, %v623
        %v625 = vmul.f32 %v624, 1.442695
        %v626 = vpow.pop %v625
        %628 = vset.pattern.permute.xlu0 0
        %629 = vperm.xlu0 %628, %v623
        %v630 = vpop.permute.xlu0 %629
        %v632 = vsub.f32 %v613, %v630
        %v633 = vmul.f32 %v632, 1.442695
        %v634 = vpow.pop %v633
        %v635 = vld [vmem:[#allocation3] sm:$0xff]
        %v636 = vmul.f32 %v626, %v635
        %v637 = vsel %vm619, %v634, 0.0
        %638 = vadd.xlane.f32.xlu0 %v637
        %v639 = vpop.xlane.xlu0 %638
        %v640 = vadd.f32 %v636, %v639
        %vm641 = vcmask 7168
        %642 = vst.msk [vmem:[#allocation3] sm:$0xff] %vm641, %v640
        %v643 = vld [vmem:[#allocation4] sm:$0xff]
        %645 = vset.pattern.permute.xlu0 0
        %646 = vperm.xlu0 %645, %v626
        %v647 = vpop.permute.xlu0 %646
        %v649 = vmul.f32 %v647, %v643
        %v650 = vpack.c.bf16 %v634, %v634
        %v652 = vsel %vm619, %v650, 0
        %vm654 = vcmask 1043456
        %v656 = vsel %vm654, %v575, 0
        %658 = vmatprep.subr.bf16.mxu0 0
        %659 = vmatpush1.bf16.msra.mxu0 %v656
        %660 = vmatprep.subr.bf16.mxu0 0
        %661 = vmatpush1.bf16.msra.mxu0 0
        %662 = vmatprep.subr.bf16.mxu0 0
        %663 = vmatpush1.bf16.msra.mxu0 0
        %664 = vmatprep.subr.bf16.mxu0 0
        %665 = vmatpush1.bf16.msra.mxu0 0
        %666 = vmatprep.subr.bf16.mxu0 0
        %667 = vmatpush1.bf16.msra.mxu0 0
        %668 = vmatprep.subr.bf16.mxu0 0
        %669 = vmatpush1.bf16.msra.mxu0 0
        %670 = vmatprep.subr.bf16.mxu0 0
        %671 = vmatpush1.bf16.msra.mxu0 0
        %672 = vmatprep.subr.bf16.mxu0 0
        %673 = vmatpush1.bf16.msra.mxu0 0
        %674 = vmatprep.subr.bf16.mxu0 0
        %675 = vmatpush1.bf16.msra.mxu0 0
        %676 = vmatprep.subr.bf16.mxu0 0
        %677 = vmatpush1.bf16.msra.mxu0 0
        %678 = vmatprep.subr.bf16.mxu0 0
        %679 = vmatpush1.bf16.msra.mxu0 0
        %680 = vmatprep.subr.bf16.mxu0 0
        %681 = vmatpush1.bf16.msra.mxu0 0
        %682 = vmatprep.subr.bf16.mxu0 0
        %683 = vmatpush1.bf16.msra.mxu0 0
        %684 = vmatprep.subr.bf16.mxu0 0
        %685 = vmatpush1.bf16.msra.mxu0 0
        %686 = vmatprep.subr.bf16.mxu0 0
        %687 = vmatpush1.bf16.msra.mxu0 0
        %688 = vmatprep.subr.bf16.mxu0 0
        %689 = vmatpush1.bf16.msra.mxu0 0
        %690 = vmatprep.mubr.bf16.mxu0 0
        %691 = vmatmul.mubr.bf16.gmra.mrb[0].mxu0 %v652
        %v692 = vpop.f32.mrb[0].mxu0
        %v693 = vadd.f32 0.0, %v692
        %v694 = vpop.f32.mrb[0].mxu0
        %v695 = vpop.f32.mrb[0].mxu0
        %v696 = vpop.f32.mrb[0].mxu0
        %697 = vdwg.mxu0
        %v698 = vadd.f32 %v649, %v693
        %699 = vst.msk [vmem:[#allocation4] sm:$0xff] %vm447, %v698
        %700 = vst.msk [vmem:[#allocation2] sm:$0xff] %vm641, %v623
        // Predicated region
        $region73: #{tpu_custom_call.1} parent=47 // pred_check
          %p701 = pneg %p413
        $region74: #{tpu_custom_call.1} parent=47 // pred_check_branch
          %703 = sbr.rel (%p701) target = $region76
        $region75: #{tpu_custom_call.1} parent=47 // pred_region
          %v704 = vld [vmem:[#allocation4] sm:$0xff]
          %v705 = vld [vmem:[#allocation3] sm:$0xff]
          %v706 = vrcp.pop %v705
          %708 = vset.pattern.permute.xlu0 0
          %709 = vperm.xlu0 %708, %v706
          %v710 = vpop.permute.xlu0 %709
          %v712 = vmul.f32 %v704, %v710
          %713 = vst.msk [vmem:[%s411] sm:$0xff] %vm447, %v712
        $region76: #{tpu_custom_call.1} parent=47 // pred_fallthru
          _
        %s714 = sand.u32 %s214, 1
        %s715 = scalar_lea.sflag [#allocation7], %s714
        %s716 = sand.u32 %s214, 1
        %s717 = smul.addr %s716, 8
        %s718 = scalar_lea.vmem [#allocation14], %s717
        // Predicated region
        $region77: #{tpu_custom_call.1} parent=47 // pred_check
          %p719 = pneg %p224
        $region78: #{tpu_custom_call.1} parent=47 // pred_check_branch
          %721 = sbr.rel (%p719) target = $region80
        $region79: #{tpu_custom_call.1} parent=47 // pred_region
          %s723 = ssub.s32 128, 128
          %724 = vsyncadd %s715, %s723
          %s725 = smul.addr %s32, 128
          %s726 = scalar_lea.hbm %s7, %s725
          %s728 = sshll.u32 %s718, 4
          %s729 = int_to_ptr.vmem [resolvable:$true] %s728
          %731 = dma.vmem_to_hbm [thread:$0]  %s729, 128, %s726, %s715
        $region80: #{tpu_custom_call.1} parent=47 // pred_fallthru
          _
      $region48: #{tpu_custom_call.1} parent=5 // pred_fallthru
        _
      %p732 = scmp.le.s32.totalorder 2, %s23
      // Predicated region
      $region81: #{tpu_custom_call.1} parent=5 // pred_check
        %p733 = pneg %p732
      $region82: #{tpu_custom_call.1} parent=5 // pred_check_branch
        %735 = sbr.rel (%p733) target = $region84
      $region83: #{tpu_custom_call.1} parent=5 // pred_region
        %s736 = ssub.s32 %s23, 2
        // Predicated region
        $region85: #{tpu_custom_call.1} parent=83 // pred_check
          %p737 = pneg %p230
        $region86: #{tpu_custom_call.1} parent=83 // pred_check_branch
          %739 = sbr.rel (%p737) target = $region88
        $region87: #{tpu_custom_call.1} parent=83 // pred_region
          %s740 = sand.u32 %s215, 1
          %s741 = scalar_lea.sflag [#allocation7], %s740
          %s742 = sand.u32 %s215, 1
          %s743 = smul.addr %s742, 8
          %s744 = scalar_lea.vmem [#allocation14], %s743
          %745 = dma.done %s741, 128
        $region88: #{tpu_custom_call.1} parent=83 // pred_fallthru
          _
      $region84: #{tpu_custom_call.1} parent=5 // pred_fallthru
        _
    $region6: #{tpu_custom_call.1} parent=1 // loop_footer
      %s27 = sadd.s32 1, %s23
    $region7: #{tpu_custom_call.1} parent=1 // loop_footer_branch
      %22 = sbr.rel target = $region3
    $region8: #{tpu_custom_call.1} parent=1 // loop_exit
      _
    %746 = vsyncpa [#allocation6], 1
    %s747 = scalar_lea.sflag [#allocation6], 1
    %748 = vsyncpa %s747, 1
    %749 = vsyncpa [#allocation9], 1
    %s750 = scalar_lea.sflag [#allocation9], 1
    %751 = vsyncpa %s750, 1
    %752 = vsyncpa [#allocation12], 1
    %753 = vsyncpa [#allocation7], 1
    %s754 = scalar_lea.sflag [#allocation7], 1
    %755 = vsyncpa %s754, 1

</llo_original>
